<compile_context>
chip_gen: v7x
topology: tpu7x:2x2x1
jax: 0.10.0
libtpu: 0.0.40
codegen_flags: <defaults>
</compile_context>

<pallas_src>
import functools

import jax
import jax.numpy as jnp
from jax.experimental import pallas as pl
from jax.experimental.pallas import tpu as pltpu


def conv3x3_kernel(x_ref, w_ref, b_ref, o_ref, p_ref, *, img_w):
    """One batch element.

    x_ref: (1, Cin, L_in)  row-padded, spatially flattened NCHW input (+1 zero lane each end)
    w_ref: (Cout, 9*Cin)   taps flattened as K = (kh*3 + kw)*Cin + ci
    b_ref: (Cout, 1)
    o_ref: (1, Cout, H*W)  channels-first, spatially flattened output (lane-dense)
    p_ref: (9*Cin, H*W)    im2col scratch (VMEM)
    """
    cin = x_ref.shape[1]
    L = o_ref.shape[2]                  # H * W (multiple of 128)

    # Column index of every output lane (hoisted out of the tap loop).
    col = jax.lax.broadcasted_iota(jnp.int32, (cin, L), 1) % img_w
    left_edge = col == 0                # kw == 0 taps would wrap into the previous row
    right_edge = col == img_w - 1       # kw == 2 taps would wrap into the next row

    # im2col: each 3x3 tap is a static lane shift of the flattened input.
    for kh in range(3):
        for kw in range(3):
            s = kh * img_w + kw                   # static lane offset of this tap
            patch = x_ref[0, :, s:s + L]          # (Cin, H*W)
            if kw == 0:
                patch = jnp.where(left_edge, 0.0, patch)
            elif kw == 2:
                patch = jnp.where(right_edge, 0.0, patch)
            t = kh * 3 + kw
            p_ref[t * cin:(t + 1) * cin, :] = patch

    # Single K = 9*Cin MXU matmul with f32 accumulation, fused bias.
    acc = jnp.dot(w_ref[...], p_ref[...], preferred_element_type=jnp.float32)
    acc = acc + b_ref[...]                        # (Cout, 1) broadcast over lanes
    o_ref[0] = acc.astype(o_ref.dtype)


def outconv_forward(x_nchw, w_oihw, bias):
    """Equivalent of nn.Conv2d(in_c, out_c, kernel_size=3, stride=1, padding=1)(x)."""
    N, Cin, H, W = x_nchw.shape
    Cout = w_oihw.shape[0]
    L_out = H * W
    L_in = L_out + 2 * W + 2            # == 1 + (H + 2) * W + 1

    # Zero-pad rows only (stays NCHW), flatten spatial, one zero lane on each end
    # so every tap shift s = kh*W + kw in [0, 2W+2] is an in-range lane slice.
    x_rows = jnp.pad(x_nchw, ((0, 0), (0, 0), (1, 1), (0, 0)))       # (N, Cin, H+2, W)
    x_flat = x_rows.reshape(N, Cin, (H + 2) * W)
    x_flat = jnp.pad(x_flat, ((0, 0), (0, 0), (1, 1)))               # (N, Cin, L_in)

    # Weight taps flattened to match the im2col row order: K = (kh*3 + kw)*Cin + ci.
    w_mat = jnp.transpose(w_oihw, (0, 2, 3, 1)).reshape(Cout, 9 * Cin)
    b2d = bias.reshape(Cout, 1).astype(jnp.float32)

    out_flat = pl.pallas_call(
        functools.partial(conv3x3_kernel, img_w=W),
        out_shape=jax.ShapeDtypeStruct((N, Cout, L_out), x_nchw.dtype),
        grid_spec=pltpu.PrefetchScalarGridSpec(
            num_scalar_prefetch=0,
            grid=(N,),
            in_specs=[
                pl.BlockSpec((1, Cin, L_in), lambda n: (n, 0, 0)),
                pl.BlockSpec((Cout, 9 * Cin), lambda n: (0, 0)),
                pl.BlockSpec((Cout, 1), lambda n: (0, 0)),
            ],
            out_specs=pl.BlockSpec((1, Cout, L_out), lambda n: (n, 0, 0)),
            scratch_shapes=[pltpu.VMEM((9 * Cin, L_out), jnp.float32)],
        ),
        compiler_params=pltpu.CompilerParams(
            dimension_semantics=("parallel",)),
    )(x_flat, w_mat, b2d)

    # Free reshape: (N, Cout, H*W) is already NCHW row-major.
    return out_flat.reshape(N, Cout, H, W)


if __name__ == "__main__":
    key = jax.random.PRNGKey(0)
    kx, kw, kb = jax.random.split(key, 3)

    N, Cin, Cout, H, W = 2, 4, 3, 16, 16

    x = jax.random.normal(kx, (N, Cin, H, W), dtype=jnp.float32)
    # Deterministic param init (Conv2d shapes: weight (Cout, Cin, 3, 3), bias (Cout,))
    fan_in = Cin * 3 * 3
    bound = 1.0 / (fan_in ** 0.5)
    w = jax.random.uniform(kw, (Cout, Cin, 3, 3), jnp.float32, -bound, bound)
    b = jax.random.uniform(kb, (Cout,), jnp.float32, -bound, bound)

    out = outconv_forward(x, w, b)
    out = jax.block_until_ready(out)

    # Cross-check against XLA's conv for correctness.
    ref = jax.lax.conv_general_dilated(
        x, w, window_strides=(1, 1), padding=((1, 1), (1, 1)),
        dimension_numbers=("NCHW", "OIHW", "NCHW")) + b[None, :, None, None]
    assert out.shape == (N, Cout, H, W)
    assert jnp.allclose(out, ref, atol=1e-4, rtol=1e-4)

    print("KERNEL_OK")
</pallas_src>

<mosaic_0001>
module attributes {stable_mosaic.version = 11 : i64} {
  func.func @conv3x3_kernel(%arg0: i32, %arg1: memref<1x4x290xf32, #tpu.memory_space<vmem>>, %arg2: memref<3x36xf32, #tpu.memory_space<vmem>>, %arg3: memref<3x1xf32, #tpu.memory_space<vmem>>, %arg4: memref<1x3x256xf32, #tpu.memory_space<vmem>>, %arg5: memref<36x256xf32, #tpu.memory_space<vmem>>) attributes {dimension_semantics = [#tpu.dimension_semantics<parallel>], iteration_bounds = array<i64: 2>, scalar_prefetch = 0 : i64, scratch_operands = 1 : i64, tpu.core_type = #tpu.core_type<tc>, window_params = [{transform_indices = @transform_0, window_bounds = array<i64: 1, 4, 290>}, {pipeline_mode = #tpu.pipeline_mode<synchronous>, transform_indices = @transform_1, window_bounds = array<i64: 3, 36>}, {pipeline_mode = #tpu.pipeline_mode<synchronous>, transform_indices = @transform_2, window_bounds = array<i64: 3, 1>}, {transform_indices = @transform_3, window_bounds = array<i64: 1, 3, 256>}]} {
    %0 = tpu.iota {dimensions = array<i32: 1>} : vector<4x256xi32>
    %c16_i32 = arith.constant 16 : i32
    %c0_i32 = arith.constant 0 : i32
    %1 = arith.cmpi eq, %c16_i32, %c0_i32 : i32
    %c1_i32 = arith.constant 1 : i32
    %2 = arith.select %1, %c1_i32, %c16_i32 : i32
    %3 = vector.broadcast %2 : i32 to vector<4x256xi32>
    %4 = arith.remsi %0, %3 : vector<4x256xi32>
    %c0_i32_0 = arith.constant 0 : i32
    %5 = vector.broadcast %c0_i32_0 : i32 to vector<4x256xi32>
    %6 = arith.cmpi ne, %4, %5 : vector<4x256xi32>
    %c0_i32_1 = arith.constant 0 : i32
    %7 = vector.broadcast %c0_i32_1 : i32 to vector<4x256xi32>
    %8 = arith.cmpi slt, %4, %7 : vector<4x256xi32>
    %c0_i32_2 = arith.constant 0 : i32
    %9 = arith.cmpi slt, %2, %c0_i32_2 : i32
    %10 = vector.broadcast %9 : i1 to vector<4x256xi1>
    %11 = vector.broadcast %10 : vector<4x256xi1> to vector<4x256xi1>
    %12 = arith.xori %8, %11 : vector<4x256xi1>
    %13 = arith.andi %12, %6 : vector<4x256xi1>
    %14 = vector.broadcast %2 : i32 to vector<4x256xi32>
    %15 = arith.addi %4, %14 : vector<4x256xi32>
    %16 = arith.select %13, %15, %4 : vector<4x256xi1>, vector<4x256xi32>
    %c0_i32_3 = arith.constant 0 : i32
    %17 = vector.broadcast %c0_i32_3 : i32 to vector<4x256xi32>
    %18 = arith.cmpi eq, %16, %17 : vector<4x256xi32>
    %c15_i32 = arith.constant 15 : i32
    %19 = vector.broadcast %c15_i32 : i32 to vector<4x256xi32>
    %20 = arith.cmpi eq, %16, %19 : vector<4x256xi32>
    %c0 = arith.constant 0 : index
    %c0_4 = arith.constant 0 : index
    %c0_5 = arith.constant 0 : index
    %21 = vector.load %arg1[%c0, %c0_4, %c0_5] : memref<1x4x290xf32, #tpu.memory_space<vmem>>, vector<1x4x256xf32>
    %22 = vector.shape_cast %21 : vector<1x4x256xf32> to vector<4x256xf32>
    %cst = arith.constant 0.000000e+00 : f32
    %23 = vector.broadcast %cst : f32 to vector<4x256xf32>
    %24 = arith.select %18, %23, %22 : vector<4x256xi1>, vector<4x256xf32>
    %c0_6 = arith.constant 0 : index
    %c0_7 = arith.constant 0 : index
    %25 = vector.load %arg5[%c0_6, %c0_7] : memref<36x256xf32, #tpu.memory_space<vmem>>, vector<4x256xf32>
    tpu.vector_store %arg5[%c0_6, %c0_7], %24 {strides = array<i32>} : memref<36x256xf32, #tpu.memory_space<vmem>>, vector<4x256xf32>,
    %c0_8 = arith.constant 0 : index
    %c0_9 = arith.constant 0 : index
    %c1 = arith.constant 1 : index
    %26 = vector.load %arg1[%c0_8, %c0_9, %c1] : memref<1x4x290xf32, #tpu.memory_space<vmem>>, vector<1x4x256xf32>
    %27 = vector.shape_cast %26 : vector<1x4x256xf32> to vector<4x256xf32>
    %c4 = arith.constant 4 : index
    %c0_10 = arith.constant 0 : index
    %28 = vector.load %arg5[%c4, %c0_10] : memref<36x256xf32, #tpu.memory_space<vmem>>, vector<4x256xf32>
    tpu.vector_store %arg5[%c4, %c0_10], %27 {strides = array<i32>} : memref<36x256xf32, #tpu.memory_space<vmem>>, vector<4x256xf32>,
    %c0_11 = arith.constant 0 : index
    %c0_12 = arith.constant 0 : index
    %c2 = arith.constant 2 : index
    %29 = vector.load %arg1[%c0_11, %c0_12, %c2] : memref<1x4x290xf32, #tpu.memory_space<vmem>>, vector<1x4x256xf32>
    %30 = vector.shape_cast %29 : vector<1x4x256xf32> to vector<4x256xf32>
    %cst_13 = arith.constant 0.000000e+00 : f32
    %31 = vector.broadcast %cst_13 : f32 to vector<4x256xf32>
    %32 = arith.select %20, %31, %30 : vector<4x256xi1>, vector<4x256xf32>
    %c8 = arith.constant 8 : index
    %c0_14 = arith.constant 0 : index
    %33 = vector.load %arg5[%c8, %c0_14] : memref<36x256xf32, #tpu.memory_space<vmem>>, vector<4x256xf32>
    tpu.vector_store %arg5[%c8, %c0_14], %32 {strides = array<i32>} : memref<36x256xf32, #tpu.memory_space<vmem>>, vector<4x256xf32>,
    %c0_15 = arith.constant 0 : index
    %c0_16 = arith.constant 0 : index
    %c16 = arith.constant 16 : index
    %34 = vector.load %arg1[%c0_15, %c0_16, %c16] : memref<1x4x290xf32, #tpu.memory_space<vmem>>, vector<1x4x256xf32>
    %35 = vector.shape_cast %34 : vector<1x4x256xf32> to vector<4x256xf32>
    %cst_17 = arith.constant 0.000000e+00 : f32
    %36 = vector.broadcast %cst_17 : f32 to vector<4x256xf32>
    %37 = arith.select %18, %36, %35 : vector<4x256xi1>, vector<4x256xf32>
    %c12 = arith.constant 12 : index
    %c0_18 = arith.constant 0 : index
    %38 = vector.load %arg5[%c12, %c0_18] : memref<36x256xf32, #tpu.memory_space<vmem>>, vector<4x256xf32>
    tpu.vector_store %arg5[%c12, %c0_18], %37 {strides = array<i32>} : memref<36x256xf32, #tpu.memory_space<vmem>>, vector<4x256xf32>,
    %c0_19 = arith.constant 0 : index
    %c0_20 = arith.constant 0 : index
    %c17 = arith.constant 17 : index
    %39 = vector.load %arg1[%c0_19, %c0_20, %c17] : memref<1x4x290xf32, #tpu.memory_space<vmem>>, vector<1x4x256xf32>
    %40 = vector.shape_cast %39 : vector<1x4x256xf32> to vector<4x256xf32>
    %c16_21 = arith.constant 16 : index
    %c0_22 = arith.constant 0 : index
    %41 = vector.load %arg5[%c16_21, %c0_22] : memref<36x256xf32, #tpu.memory_space<vmem>>, vector<4x256xf32>
    tpu.vector_store %arg5[%c16_21, %c0_22], %40 {strides = array<i32>} : memref<36x256xf32, #tpu.memory_space<vmem>>, vector<4x256xf32>,
    %c0_23 = arith.constant 0 : index
    %c0_24 = arith.constant 0 : index
    %c18 = arith.constant 18 : index
    %42 = vector.load %arg1[%c0_23, %c0_24, %c18] : memref<1x4x290xf32, #tpu.memory_space<vmem>>, vector<1x4x256xf32>
    %43 = vector.shape_cast %42 : vector<1x4x256xf32> to vector<4x256xf32>
    %cst_25 = arith.constant 0.000000e+00 : f32
    %44 = vector.broadcast %cst_25 : f32 to vector<4x256xf32>
    %45 = arith.select %20, %44, %43 : vector<4x256xi1>, vector<4x256xf32>
    %c20 = arith.constant 20 : index
    %c0_26 = arith.constant 0 : index
    %46 = vector.load %arg5[%c20, %c0_26] : memref<36x256xf32, #tpu.memory_space<vmem>>, vector<4x256xf32>
    tpu.vector_store %arg5[%c20, %c0_26], %45 {strides = array<i32>} : memref<36x256xf32, #tpu.memory_space<vmem>>, vector<4x256xf32>,
    %c0_27 = arith.constant 0 : index
    %c0_28 = arith.constant 0 : index
    %c32 = arith.constant 32 : index
    %47 = vector.load %arg1[%c0_27, %c0_28, %c32] : memref<1x4x290xf32, #tpu.memory_space<vmem>>, vector<1x4x256xf32>
    %48 = vector.shape_cast %47 : vector<1x4x256xf32> to vector<4x256xf32>
    %cst_29 = arith.constant 0.000000e+00 : f32
    %49 = vector.broadcast %cst_29 : f32 to vector<4x256xf32>
    %50 = arith.select %18, %49, %48 : vector<4x256xi1>, vector<4x256xf32>
    %c24 = arith.constant 24 : index
    %c0_30 = arith.constant 0 : index
    %51 = vector.load %arg5[%c24, %c0_30] : memref<36x256xf32, #tpu.memory_space<vmem>>, vector<4x256xf32>
    tpu.vector_store %arg5[%c24, %c0_30], %50 {strides = array<i32>} : memref<36x256xf32, #tpu.memory_space<vmem>>, vector<4x256xf32>,
    %c0_31 = arith.constant 0 : index
    %c0_32 = arith.constant 0 : index
    %c33 = arith.constant 33 : index
    %52 = vector.load %arg1[%c0_31, %c0_32, %c33] : memref<1x4x290xf32, #tpu.memory_space<vmem>>, vector<1x4x256xf32>
    %53 = vector.shape_cast %52 : vector<1x4x256xf32> to vector<4x256xf32>
    %c28 = arith.constant 28 : index
    %c0_33 = arith.constant 0 : index
    %54 = vector.load %arg5[%c28, %c0_33] : memref<36x256xf32, #tpu.memory_space<vmem>>, vector<4x256xf32>
    tpu.vector_store %arg5[%c28, %c0_33], %53 {strides = array<i32>} : memref<36x256xf32, #tpu.memory_space<vmem>>, vector<4x256xf32>,
    %c0_34 = arith.constant 0 : index
    %c0_35 = arith.constant 0 : index
    %c34 = arith.constant 34 : index
    %55 = vector.load %arg1[%c0_34, %c0_35, %c34] : memref<1x4x290xf32, #tpu.memory_space<vmem>>, vector<1x4x256xf32>
    %56 = vector.shape_cast %55 : vector<1x4x256xf32> to vector<4x256xf32>
    %cst_36 = arith.constant 0.000000e+00 : f32
    %57 = vector.broadcast %cst_36 : f32 to vector<4x256xf32>
    %58 = arith.select %20, %57, %56 : vector<4x256xi1>, vector<4x256xf32>
    %c32_37 = arith.constant 32 : index
    %c0_38 = arith.constant 0 : index
    %59 = vector.load %arg5[%c32_37, %c0_38] : memref<36x256xf32, #tpu.memory_space<vmem>>, vector<4x256xf32>
    tpu.vector_store %arg5[%c32_37, %c0_38], %58 {strides = array<i32>} : memref<36x256xf32, #tpu.memory_space<vmem>>, vector<4x256xf32>,
    %c0_39 = arith.constant 0 : index
    %c0_40 = arith.constant 0 : index
    %60 = vector.load %arg2[%c0_39, %c0_40] : memref<3x36xf32, #tpu.memory_space<vmem>>, vector<3x36xf32>
    %c0_41 = arith.constant 0 : index
    %c0_42 = arith.constant 0 : index
    %61 = vector.load %arg5[%c0_41, %c0_42] : memref<36x256xf32, #tpu.memory_space<vmem>>, vector<36x256xf32>
    %cst_43 = arith.constant dense<0.000000e+00> : vector<3x256xf32>
    %62 = tpu.matmul %60, %61, %cst_43 {dimension_numbers = #tpu.dot_dimension_numbers<[1], [0], [0], [1], [0, 0, 1, 1], [], []>} : vector<3x36xf32>, vector<36x256xf32>, vector<3x256xf32> -> vector<3x256xf32>
    %c0_44 = arith.constant 0 : index
    %c0_45 = arith.constant 0 : index
    %63 = vector.load %arg3[%c0_44, %c0_45] : memref<3x1xf32, #tpu.memory_space<vmem>>, vector<3x1xf32>
    %64 = vector.broadcast %63 : vector<3x1xf32> to vector<3x256xf32>
    %65 = arith.addf %62, %64 : vector<3x256xf32>
    %c0_46 = arith.constant 0 : index
    %c0_47 = arith.constant 0 : index
    %c0_48 = arith.constant 0 : index
    %66 = vector.load %arg4[%c0_46, %c0_47, %c0_48] : memref<1x3x256xf32, #tpu.memory_space<vmem>>, vector<1x3x256xf32>
    %67 = vector.shape_cast %66 : vector<1x3x256xf32> to vector<3x256xf32>
    %68 = vector.shape_cast %65 : vector<3x256xf32> to vector<1x3x256xf32>
    tpu.vector_store %arg4[%c0_46, %c0_47, %c0_48], %68 {strides = array<i32>} : memref<1x3x256xf32, #tpu.memory_space<vmem>>, vector<1x3x256xf32>,
    return
  }
  func.func @transform_0(%arg0: i32) -> (i32, i32, i32) {
    %c0_i32 = arith.constant 0 : i32
    %c0_i32_0 = arith.constant 0 : i32
    %c0_i32_1 = arith.constant 0 : i32
    return %arg0, %c0_i32, %c0_i32_0 : i32, i32, i32
  }
  func.func @transform_1(%arg0: i32) -> (i32, i32) {
    %c0_i32 = arith.constant 0 : i32
    %c0_i32_0 = arith.constant 0 : i32
    %c0_i32_1 = arith.constant 0 : i32
    return %c0_i32, %c0_i32_0 : i32, i32
  }
  func.func @transform_2(%arg0: i32) -> (i32, i32) {
    %c0_i32 = arith.constant 0 : i32
    %c0_i32_0 = arith.constant 0 : i32
    %c0_i32_1 = arith.constant 0 : i32
    return %c0_i32, %c0_i32_0 : i32, i32
  }
  func.func @transform_3(%arg0: i32) -> (i32, i32, i32) {
    %c0_i32 = arith.constant 0 : i32
    %c0_i32_0 = arith.constant 0 : i32
    %c0_i32_1 = arith.constant 0 : i32
    return %arg0, %c0_i32, %c0_i32_0 : i32, i32, i32
  }
}

</mosaic_0001>

<llo_original>
// kernel: tpu_custom_call.1
$region0: #{tpu_custom_call.1}
  #allocation0 [shape = 'u32[]', space=smem, size = 0x4, offset = 0x4, fixed_abs, tag = 'smem constant byte address 0x4 - core index']
  #allocation1 [shape = 'u32[144,128]{1,0:T(1,128)}', space=vmem, size = 0x12000, scoped, tag = 'internal scratch']
  #allocation2 [shape = 'f32[36,256]{1,0:T(8,128)}', space=vmem, size = 0xa000, scoped, tag = 'scratch operand']
  %s0 = inlined_call_operand.hbm [shape: f32[2,4,290], index: 0, kind: input, shape index: {}]
  %s1 = inlined_call_operand.vmem [shape: f32[3,36], index: 1, kind: input, shape index: {}]
  %s2 = inlined_call_operand.vmem [shape: f32[3,1], index: 2, kind: input, shape index: {}]
  %s3 = inlined_call_operand.vmem [shape: f32[2,3,256], index: 3, kind: output, shape index: {}]
  %s4 = sld [smem:[#allocation0]]
  $region49: #{tpu_custom_call.1} parent=0
    _
  %s6 = ssub.s32 1, %s4
  %s7 = scalar_select 0, %s6, %s4
  $region1: #{tpu_custom_call.1} parent=0
    #allocation3 [shape = 'u8[12288]{0}', space=vmem, size = 0x3000, scoped, tag = 'input window, operand 0']
    #allocation4 [shape = 's32[2]{0}', space=sflag, size = 0x8, scoped, tag = 'scoped memory for tpu_custom_call.1']
    %8 = vsyncpa [#allocation4], 0
    %s9 = scalar_lea.sflag [#allocation4], 1
    %10 = vsyncpa %s9, 0
    loop: start=0, step=1, limit=4
    $region2: #{tpu_custom_call.1} parent=1 // loop_pre_header
      _
    $region3: #{tpu_custom_call.1} parent=1 // loop_header
      %s12 = sphi 0, %s16
      %p13 = scmp.ge.s32.totalorder %s12, 4
      %s22 = sphi 0, %s24
      %s25 = sphi 0, %s22
      %s26 = sphi 0, %s25
      %s42 = sphi 0, %s26
      %s46 = sphi 0, %s46
      %s48 = sphi 0, %s46
      %s49 = sphi 0, %s48
      %s63 = sphi 0, %s49
      %s67 = sphi 0, %s67
      %s69 = sphi 0, %s67
      %s70 = sphi 0, %s69
      %s84 = sphi 0, %s70
      %s90 = sphi 0, %s92
      %s93 = sphi 0, %s90
      %s94 = sphi 0, %s93
      %s110 = sphi 0, %s94
    $region4: #{tpu_custom_call.1} parent=1 // loop_header_branch
      %15 = sbr.rel (%p13) target = $region8
    $region5: #{tpu_custom_call.1} parent=1 // loop_body
      %s17 = ssub.s32 %s12, 1
      %s18 = ssub.s32 %s12, 2
      %s19 = sadd.s32 %s12, 1
      %s20 = ssub.s32 %s12, %s19
      %p21 = scmp.eq.s32.totalorder %s20, 0
      %s23 = sadd.s32 %s22, 1
      %s24 = scalar_select %p21, %s22, %s23
      %p27 = pneg %p21
      %p28 = scmp.eq.s32.totalorder %s12, 1
      %p29 = por %p27, %p28
      %p30 = scmp.ne.s32.totalorder %s22, %s25
      %p31 = scmp.eq.s32.totalorder %s12, 0
      %p32 = por %p30, %p31
      %p33 = scmp.ne.s32.totalorder %s22, %s25
      %p34 = scmp.eq.s32.totalorder %s17, 1
      %p35 = por %p33, %p34
      %p36 = scmp.ne.s32.totalorder %s25, %s26
      %p37 = scmp.eq.s32.totalorder %s17, 0
      %p38 = por %p36, %p37
      %p39 = scmp.ne.s32.totalorder %s25, %s26
      %p40 = scmp.eq.s32.totalorder %s18, 1
      %p41 = por %p39, %p40
      %p43 = scmp.ne.s32.totalorder %s26, %s42
      %p44 = scmp.eq.s32.totalorder %s18, 0
      %p45 = por %p43, %p44
      %s47 = sadd.s32 %s46, 1
      %p50 = scmp.eq.s32.totalorder %s12, 1
      %p51 = scmp.ne.s32.totalorder %s46, %s48
      %p52 = scmp.eq.s32.totalorder %s12, 0
      %p53 = por %p51, %p52
      %p54 = scmp.ne.s32.totalorder %s46, %s48
      %p55 = scmp.eq.s32.totalorder %s17, 1
      %p56 = por %p54, %p55
      %p57 = scmp.ne.s32.totalorder %s48, %s49
      %p58 = scmp.eq.s32.totalorder %s17, 0
      %p59 = por %p57, %p58
      %p60 = scmp.ne.s32.totalorder %s48, %s49
      %p61 = scmp.eq.s32.totalorder %s18, 1
      %p62 = por %p60, %p61
      %p64 = scmp.ne.s32.totalorder %s49, %s63
      %p65 = scmp.eq.s32.totalorder %s18, 0
      %p66 = por %p64, %p65
      %s68 = sadd.s32 %s67, 1
      %p71 = scmp.eq.s32.totalorder %s12, 1
      %p72 = scmp.ne.s32.totalorder %s67, %s69
      %p73 = scmp.eq.s32.totalorder %s12, 0
      %p74 = por %p72, %p73
      %p75 = scmp.ne.s32.totalorder %s67, %s69
      %p76 = scmp.eq.s32.totalorder %s17, 1
      %p77 = por %p75, %p76
      %p78 = scmp.ne.s32.totalorder %s69, %s70
      %p79 = scmp.eq.s32.totalorder %s17, 0
      %p80 = por %p78, %p79
      %p81 = scmp.ne.s32.totalorder %s69, %s70
      %p82 = scmp.eq.s32.totalorder %s18, 1
      %p83 = por %p81, %p82
      %p85 = scmp.ne.s32.totalorder %s70, %s84
      %p86 = scmp.eq.s32.totalorder %s18, 0
      %p87 = por %p85, %p86
      %s88 = ssub.s32 %s12, %s19
      %p89 = scmp.eq.s32.totalorder %s88, 0
      %s91 = sadd.s32 %s90, 1
      %s92 = scalar_select %p89, %s90, %s91
      %p95 = pneg %p89
      %p96 = scmp.eq.s32.totalorder %s12, 1
      %p97 = por %p95, %p96
      %p98 = scmp.ne.s32.totalorder %s90, %s93
      %p99 = scmp.eq.s32.totalorder %s12, 0
      %p100 = por %p98, %p99
      %p101 = scmp.ne.s32.totalorder %s90, %s93
      %p102 = scmp.eq.s32.totalorder %s17, 1
      %p103 = por %p101, %p102
      %p104 = scmp.ne.s32.totalorder %s93, %s94
      %p105 = scmp.eq.s32.totalorder %s17, 0
      %p106 = por %p104, %p105
      %p107 = scmp.ne.s32.totalorder %s93, %s94
      %p108 = scmp.eq.s32.totalorder %s18, 1
      %p109 = por %p107, %p108
      %p111 = scmp.ne.s32.totalorder %s94, %s110
      %p112 = scmp.eq.s32.totalorder %s18, 0
      %p113 = por %p111, %p112
      %p114 = scmp.le.s32.totalorder 1, %s12
      %p115 = scmp.lt.s32.totalorder %s12, 3
      %p116 = pnand %p114, %p115
      %p117 = pneg %p116
      // Predicated region
      $region9: #{tpu_custom_call.1} parent=5 // pred_check
        _
      $region10: #{tpu_custom_call.1} parent=5 // pred_check_branch
        %119 = sbr.rel (%p116) target = $region12
      $region11: #{tpu_custom_call.1} parent=5 // pred_region
        %s120 = ssub.s32 %s12, 1
        // Predicated region
        $region13: #{tpu_custom_call.1} parent=11 // pred_check
          %p121 = pneg %p59
        $region14: #{tpu_custom_call.1} parent=11 // pred_check_branch
          %123 = sbr.rel (%p121) target = $region16
        $region15: #{tpu_custom_call.1} parent=11 // pred_region
          _
        $region16: #{tpu_custom_call.1} parent=11 // pred_fallthru
          _
        // Predicated region
        $region17: #{tpu_custom_call.1} parent=11 // pred_check
          %p124 = pneg %p80
        $region18: #{tpu_custom_call.1} parent=11 // pred_check_branch
          %126 = sbr.rel (%p124) target = $region20
        $region19: #{tpu_custom_call.1} parent=11 // pred_region
          _
        $region20: #{tpu_custom_call.1} parent=11 // pred_fallthru
          _
      $region12: #{tpu_custom_call.1} parent=5 // pred_fallthru
        _
      %p127 = scmp.lt.s32.totalorder %s12, 2
      // Predicated region
      $region21: #{tpu_custom_call.1} parent=5 // pred_check
        %p128 = pneg %p127
      $region22: #{tpu_custom_call.1} parent=5 // pred_check_branch
        %130 = sbr.rel (%p128) target = $region24
      $region23: #{tpu_custom_call.1} parent=5 // pred_region
        // Predicated region
        $region25: #{tpu_custom_call.1} parent=23 // pred_check
          %p131 = pneg %p32
        $region26: #{tpu_custom_call.1} parent=23 // pred_check_branch
          %133 = sbr.rel (%p131) target = $region28
        $region27: #{tpu_custom_call.1} parent=23 // pred_region
          %s134 = sand.u32 %s22, 1
          %s135 = scalar_lea.sflag [#allocation4], %s134
          %s136 = sand.u32 %s22, 1
          %s137 = smul.addr %s136, 12
          %s138 = scalar_lea.vmem [#allocation3], %s137
          %s140 = ssub.s32 192, 192
          %141 = vsyncadd %s135, %s140
          %s142 = smul.addr %s12, 3
          %s143 = smul.addr %s142, 64
          %s144 = scalar_lea.hbm %s0, %s143
          %s146 = sshll.u32 %s138, 4
          %s147 = int_to_ptr.vmem [resolvable:$true] %s146
          %149 = dma.hbm_to_vmem [thread:$0]  %s144, 192, %s147, %s135
        $region28: #{tpu_custom_call.1} parent=23 // pred_fallthru
          _
      $region24: #{tpu_custom_call.1} parent=5 // pred_fallthru
        _
      %p150 = scmp.le.s32.totalorder 1, %s12
      %p151 = scmp.lt.s32.totalorder %s12, 3
      %p152 = pnand %p150, %p151
      %p153 = pneg %p152
      // Predicated region
      $region29: #{tpu_custom_call.1} parent=5 // pred_check
        _
      $region30: #{tpu_custom_call.1} parent=5 // pred_check_branch
        %155 = sbr.rel (%p152) target = $region32
      $region31: #{tpu_custom_call.1} parent=5 // pred_region
        %s156 = ssub.s32 %s12, 1
        %s157 = sand.u32 %s25, 1
        %s158 = scalar_lea.sflag [#allocation4], %s157
        %s159 = sand.u32 %s25, 1
        %s160 = smul.addr %s159, 12
        %s161 = scalar_lea.vmem [#allocation3], %s160
        // Predicated region
        $region33: #{tpu_custom_call.1} parent=31 // pred_check
          %p162 = pneg %p38
        $region34: #{tpu_custom_call.1} parent=31 // pred_check_branch
          %164 = sbr.rel (%p162) target = $region36
        $region35: #{tpu_custom_call.1} parent=31 // pred_region
          %165 = dma.done %s158, 192
        $region36: #{tpu_custom_call.1} parent=31 // pred_fallthru
          _
        %s166 = sand.u32 %s25, 1
        %s167 = scalar_lea.sflag [#allocation4], %s166
        %s168 = sand.u32 %s25, 1
        %s169 = smul.addr %s168, 12
        %s170 = scalar_lea.vmem [#allocation3], %s169
        %p171 = pneg %p38
        %p172 = pneg %p35
        %p173 = pneg %p59
        %p174 = pneg %p56
        %p175 = pneg %p80
        %p176 = pneg %p77
        %p177 = pneg %p106
        %p178 = pneg %p103
        %p179 = scmp.lt.s32.totalorder %s17, 1
        %s180 = scalar_select %p179, %s17, 1
        %s181 = smul.addr %s180, 2
        %s182 = smul.addr %s181, 4
        %s183 = scalar_lea.vmem %s3, %s182
        %p184 = scmp.lt.s32.totalorder %s17, 1
        %s185 = scalar_select %p184, %s17, 1
        %s186 = smul.addr %s185, 2
        %s187 = smul.addr %s186, 4
        %s188 = scalar_lea.vmem %s3, %s187
        %v189 = vlaneseq
        %v190 = vand.u32 %v189, 127
        %v191 = vadd.s32 %v190, 128
        %vm192 = vcmp.lt.s32.totalorder %v190, 0
        %v193 = vsub.s32 0, %v190
        %v194 = vsel %vm192, %v193, %v190
        %v195 = vshrl.u32 %v194, 4
        %v196 = vand.u32 %v194, 15
        %v197 = vsub.s32 0, %v196
        %v198 = vsel %vm192, %v197, %v196
        %vm199 = vcmp.lt.s32.totalorder %v191, 0
        %v200 = vsub.s32 0, %v191
        %v201 = vsel %vm199, %v200, %v191
        %v202 = vshrl.u32 %v201, 4
        %v203 = vand.u32 %v201, 15
        %v204 = vsub.s32 0, %v203
        %v205 = vsel %vm199, %v204, %v203
        %vm206 = vcmp.ne.s32.totalorder %v198, 0
        %vm207 = vcmp.ne.s32.totalorder %v205, 0
        %vm208 = vcmp.lt.s32.totalorder %v198, 0
        %vm209 = vcmp.lt.s32.totalorder %v205, 0
        %vm210 = vmand %vm208, %vm206
        %vm211 = vmand %vm209, %vm207
        %v212 = vadd.s32 %v198, 16
        %v213 = vadd.s32 %v205, 16
        %v214 = vsel %vm210, %v212, %v198
        %v215 = vsel %vm211, %v213, %v205
        %vm216 = vcmp.eq.s32.totalorder %v214, 0
        %vm217 = vcmp.eq.s32.totalorder %v215, 0
        %vm218 = vcmp.eq.s32.totalorder %v214, 15
        %vm219 = vcmp.eq.s32.totalorder %v215, 15
        %v220 = vld [vmem:[%s161] sm:$0xff]
        %v222 = vcombine.high %v220, %v220
        %v224 = vsel %vm216, 0.0, %v220
        %v225 = vsel %vm217, 0.0, %v222
        %226 = vst [vmem:[#allocation2] sm:$0xf] %v224
        %227 = vst [vmem:[#allocation2 + $0x8] sm:$0xf] %v225
        %v228 = vld [vmem:[%s161] sm:$0xff]
        %v229 = vld [vmem:[%s161 + $0x8] sm:$0xf]
        %v232 = vcombine.low %v228, %v228
        %v233 = vcombine.low %v229, %v229
        %234 = vrot.lane.b32.xlu0 %v232, 127
        %v235 = vpop.permute.xlu0 %234
        %236 = vrot.lane.b32.xlu0 %v228, 127
        %v237 = vpop.permute.xlu0 %236
        %238 = vrot.lane.b32.xlu0 %v233, 127
        %v239 = vpop.permute.xlu0 %238
        %vm240 = vcmask 1039360
        %v241 = vsel %vm240, %v235, %v237
        %v242 = vsel %vm240, %v237, %v239
        %245 = vst [vmem:[#allocation2] sm:$0xf0] %v241
        %246 = vst [vmem:[#allocation2 + $0x8] sm:$0xf0] %v242
        %v247 = vld [vmem:[%s161] sm:$0xff]
        %v248 = vld [vmem:[%s161 + $0x8] sm:$0xf]
        %v251 = vcombine.high %v247, %v247
        %252 = vrot.lane.b32.xlu0 %v247, 126
        %v253 = vpop.permute.xlu0 %252
        %254 = vrot.lane.b32.xlu0 %v251, 126
        %v255 = vpop.permute.xlu0 %254
        %256 = vrot.lane.b32.xlu0 %v248, 126
        %v257 = vpop.permute.xlu0 %256
        %vm258 = vcmask 1031168
        %v259 = vsel %vm258, %v253, %v255
        %v260 = vsel %vm258, %v255, %v257
        %v263 = vsel %vm218, 0.0, %v259
        %v264 = vsel %vm219, 0.0, %v260
        %265 = vst [vmem:[#allocation2 + $0x10] sm:$0xf] %v263
        %266 = vst [vmem:[#allocation2 + $0x18] sm:$0xf] %v264
        %v267 = vld [vmem:[%s161] sm:$0xff]
        %v268 = vld [vmem:[%s161 + $0x8] sm:$0xf]
        %v271 = vcombine.high %v267, %v267
        %272 = vrot.lane.b32.xlu0 %v267, 112
        %v273 = vpop.permute.xlu0 %272
        %274 = vrot.lane.b32.xlu0 %v271, 112
        %v275 = vpop.permute.xlu0 %274
        %276 = vrot.lane.b32.xlu0 %v268, 112
        %v277 = vpop.permute.xlu0 %276
        %vm278 = vcmask 916480
        %v279 = vsel %vm278, %v273, %v275
        %v280 = vsel %vm278, %v275, %v277
        %v283 = vsel %vm216, 0.0, %v279
        %v284 = vsel %vm217, 0.0, %v280
        %v287 = vrot.slane %v283, 4
        %v288 = vrot.slane %v284, 4
        %291 = vst [vmem:[#allocation2 + $0x10] sm:$0xf0] %v287
        %292 = vst [vmem:[#allocation2 + $0x18] sm:$0xf0] %v288
        %v293 = vld [vmem:[%s161] sm:$0xff]
        %v294 = vld [vmem:[%s161 + $0x8] sm:$0xf]
        %v297 = vcombine.high %v293, %v293
        %298 = vrot.lane.b32.xlu0 %v293, 111
        %v299 = vpop.permute.xlu0 %298
        %300 = vrot.lane.b32.xlu0 %v297, 111
        %v301 = vpop.permute.xlu0 %300
        %302 = vrot.lane.b32.xlu0 %v294, 111
        %v303 = vpop.permute.xlu0 %302
        %vm304 = vcmask 908288
        %v305 = vsel %vm304, %v299, %v301
        %v306 = vsel %vm304, %v301, %v303
        %309 = vst [vmem:[#allocation2 + $0x20] sm:$0xf] %v305
        %310 = vst [vmem:[#allocation2 + $0x28] sm:$0xf] %v306
        %v311 = vld [vmem:[%s161] sm:$0xff]
        %v312 = vld [vmem:[%s161 + $0x8] sm:$0xf]
        %v315 = vcombine.high %v311, %v311
        %316 = vrot.lane.b32.xlu0 %v311, 110
        %v317 = vpop.permute.xlu0 %316
        %318 = vrot.lane.b32.xlu0 %v315, 110
        %v319 = vpop.permute.xlu0 %318
        %320 = vrot.lane.b32.xlu0 %v312, 110
        %v321 = vpop.permute.xlu0 %320
        %vm322 = vcmask 900096
        %v323 = vsel %vm322, %v317, %v319
        %v324 = vsel %vm322, %v319, %v321
        %v327 = vsel %vm218, 0.0, %v323
        %v328 = vsel %vm219, 0.0, %v324
        %v331 = vrot.slane %v327, 4
        %v332 = vrot.slane %v328, 4
        %335 = vst [vmem:[#allocation2 + $0x20] sm:$0xf0] %v331
        %336 = vst [vmem:[#allocation2 + $0x28] sm:$0xf0] %v332
        %v337 = vld [vmem:[%s161] sm:$0xff]
        %v338 = vld [vmem:[%s161 + $0x8] sm:$0xf]
        %v341 = vcombine.high %v337, %v337
        %342 = vrot.lane.b32.xlu0 %v337, 96
        %v343 = vpop.permute.xlu0 %342
        %344 = vrot.lane.b32.xlu0 %v341, 96
        %v345 = vpop.permute.xlu0 %344
        %346 = vrot.lane.b32.xlu0 %v338, 96
        %v347 = vpop.permute.xlu0 %346
        %vm348 = vcmask 785408
        %v349 = vsel %vm348, %v343, %v345
        %v350 = vsel %vm348, %v345, %v347
        %v353 = vsel %vm216, 0.0, %v349
        %v354 = vsel %vm217, 0.0, %v350
        %355 = vst [vmem:[#allocation2 + $0x30] sm:$0xf] %v353
        %356 = vst [vmem:[#allocation2 + $0x38] sm:$0xf] %v354
        %v357 = vld [vmem:[%s161] sm:$0xff]
        %v358 = vld [vmem:[%s161 + $0x8] sm:$0xf]
        %v361 = vcombine.low %v357, %v357
        %v362 = vcombine.low %v358, %v358
        %363 = vrot.lane.b32.xlu0 %v361, 95
        %v364 = vpop.permute.xlu0 %363
        %365 = vrot.lane.b32.xlu0 %v357, 95
        %v366 = vpop.permute.xlu0 %365
        %367 = vrot.lane.b32.xlu0 %v362, 95
        %v368 = vpop.permute.xlu0 %367
        %vm369 = vcmask 777216
        %v370 = vsel %vm369, %v364, %v366
        %v371 = vsel %vm369, %v366, %v368
        %374 = vst [vmem:[#allocation2 + $0x30] sm:$0xf0] %v370
        %375 = vst [vmem:[#allocation2 + $0x38] sm:$0xf0] %v371
        %v376 = vld [vmem:[%s161] sm:$0xff]
        %v377 = vld [vmem:[%s161 + $0x8] sm:$0xf]
        %v380 = vcombine.high %v376, %v376
        %381 = vrot.lane.b32.xlu0 %v376, 94
        %v382 = vpop.permute.xlu0 %381
        %383 = vrot.lane.b32.xlu0 %v380, 94
        %v384 = vpop.permute.xlu0 %383
        %385 = vrot.lane.b32.xlu0 %v377, 94
        %v386 = vpop.permute.xlu0 %385
        %vm387 = vcmask 769024
        %v388 = vsel %vm387, %v382, %v384
        %v389 = vsel %vm387, %v384, %v386
        %v392 = vsel %vm218, 0.0, %v388
        %v393 = vsel %vm219, 0.0, %v389
        %394 = vst [vmem:[#allocation2 + $0x40] sm:$0xf] %v392
        %395 = vst [vmem:[#allocation2 + $0x48] sm:$0xf] %v393
        %v396 = vld [vmem:[%s1] sm:$0x7]
        %v397 = vld [vmem:[#allocation2] sm:$0xff]
        %v398 = vld [vmem:[#allocation2 + $0x8] sm:$0xff]
        %v399 = vld [vmem:[#allocation2 + $0x10] sm:$0xff]
        %v400 = vld [vmem:[#allocation2 + $0x18] sm:$0xff]
        %v401 = vld [vmem:[#allocation2 + $0x20] sm:$0xff]
        %v402 = vld [vmem:[#allocation2 + $0x28] sm:$0xff]
        %v403 = vld [vmem:[#allocation2 + $0x30] sm:$0xff]
        %v404 = vld [vmem:[#allocation2 + $0x38] sm:$0xff]
        %v405 = vld [vmem:[#allocation2 + $0x40] sm:$0xf]
        %v406 = vld [vmem:[#allocation2 + $0x48] sm:$0xf]
        %v407 = vld [vmem:[%s2] sm:$0x7]
        %409 = vset.pattern.permute.xlu0 0
        %410 = vperm.xlu0 %409, %v407
        %v411 = vpop.permute.xlu0 %410
        %vm413 = vcmask 293888
        %v415 = vsel %vm413, %v396, 0
        %vm417 = vcmask 1043456
        %v419 = vsel %vm417, %v405, 0
        %v422 = vsel %vm417, %v406, 0
        %424 = vmatprep.subr.mxu0 %v398
        %425 = vmatpush1.msra.mxu0 %v397
        %426 = vmatprep.subr.mxu0 %v400
        %427 = vmatpush1.msra.mxu0 %v399
        %428 = vmatprep.subr.mxu0 %v402
        %429 = vmatpush1.msra.mxu0 %v401
        %430 = vmatprep.subr.mxu0 %v404
        %431 = vmatpush1.msra.mxu0 %v403
        %432 = vmatprep.subr.mxu0 %v422
        %433 = vmatpush1.msra.mxu0 %v419
        %434 = vmatprep.subr.mxu0 0.0
        %435 = vmatpush1.msra.mxu0 0.0
        %436 = vmatprep.subr.mxu0 0.0
        %437 = vmatpush1.msra.mxu0 0.0
        %438 = vmatprep.subr.mxu0 0.0
        %439 = vmatpush1.msra.mxu0 0.0
        %440 = vmatprep.subr.mxu0 0.0
        %441 = vmatpush1.msra.mxu0 0.0
        %442 = vmatprep.subr.mxu0 0.0
        %443 = vmatpush1.msra.mxu0 0.0
        %444 = vmatprep.subr.mxu0 0.0
        %445 = vmatpush1.msra.mxu0 0.0
        %446 = vmatprep.subr.mxu0 0.0
        %447 = vmatpush1.msra.mxu0 0.0
        %448 = vmatprep.subr.mxu0 0.0
        %449 = vmatpush1.msra.mxu0 0.0
        %450 = vmatprep.subr.mxu0 0.0
        %451 = vmatpush1.msra.mxu0 0.0
        %452 = vmatprep.subr.mxu0 0.0
        %453 = vmatpush1.msra.mxu0 0.0
        %454 = vmatprep.subr.mxu0 0.0
        %455 = vmatpush1.msra.mxu0 0.0
        %456 = vmatprep.subr.mxu0 0.0
        %457 = vmatpush1.msra.mxu0 0.0
        %458 = vmatprep.subr.mxu0 0.0
        %459 = vmatpush1.msra.mxu0 0.0
        %460 = vmatprep.subr.mxu0 0.0
        %461 = vmatpush1.msra.mxu0 0.0
        %462 = vmatprep.subr.mxu0 0.0
        %463 = vmatpush1.msra.mxu0 0.0
        %464 = vmatprep.subr.mxu0 0.0
        %465 = vmatpush1.msra.mxu0 0.0
        %466 = vmatprep.subr.mxu0 0.0
        %467 = vmatpush1.msra.mxu0 0.0
        %468 = vmatprep.subr.mxu0 0.0
        %469 = vmatpush1.msra.mxu0 0.0
        %470 = vmatprep.subr.mxu0 0.0
        %471 = vmatpush1.msra.mxu0 0.0
        %472 = vmatprep.subr.mxu0 0.0
        %473 = vmatpush1.msra.mxu0 0.0
        %474 = vmatprep.subr.mxu0 0.0
        %475 = vmatpush1.msra.mxu0 0.0
        %476 = vmatprep.subr.mxu0 0.0
        %477 = vmatpush1.msra.mxu0 0.0
        %478 = vmatprep.subr.mxu0 0.0
        %479 = vmatpush1.msra.mxu0 0.0
        %480 = vmatprep.subr.mxu0 0.0
        %481 = vmatpush1.msra.mxu0 0.0
        %482 = vmatprep.subr.mxu0 0.0
        %483 = vmatpush1.msra.mxu0 0.0
        %484 = vmatprep.subr.mxu0 0.0
        %485 = vmatpush1.msra.mxu0 0.0
        %486 = vmatprep.subr.mxu0 0.0
        %487 = vmatpush1.msra.mxu0 0.0
        %488 = vmatprep.mubr.f32.mxu0 0.0
        %489 = vmatmul.mubr.f32.gmra.mrb[0].mxu0 %v415
        %v490 = vpop.f32.mrb[0].mxu0
        %v491 = vadd.f32 %v411, %v490
        %v492 = vpop.f32.mrb[0].mxu0
        %v493 = vadd.f32 %v411, %v492
        %494 = vdwg.mxu0
        %v497 = vcombine.low %v491, %v493
        %499 = vst [vmem:[%s188] sm:$0x77] %v497
        %p500 = scmp.lt.s32.totalorder %s17, 1
        %s501 = scalar_select %p500, %s17, 1
        %s502 = smul.addr %s501, 2
        %s503 = smul.addr %s502, 4
        %s504 = scalar_lea.vmem %s3, %s503
        // Predicated region
        $region37: #{tpu_custom_call.1} parent=31 // pred_check
          %p505 = pneg %p103
        $region38: #{tpu_custom_call.1} parent=31 // pred_check_branch
          %507 = sbr.rel (%p505) target = $region40
        $region39: #{tpu_custom_call.1} parent=31 // pred_region
          _
        $region40: #{tpu_custom_call.1} parent=31 // pred_fallthru
          _
      $region32: #{tpu_custom_call.1} parent=5 // pred_fallthru
        _
      %p508 = scmp.le.s32.totalorder 2, %s12
      // Predicated region
      $region41: #{tpu_custom_call.1} parent=5 // pred_check
        %p509 = pneg %p508
      $region42: #{tpu_custom_call.1} parent=5 // pred_check_branch
        %511 = sbr.rel (%p509) target = $region44
      $region43: #{tpu_custom_call.1} parent=5 // pred_region
        %s512 = ssub.s32 %s12, 2
        // Predicated region
        $region45: #{tpu_custom_call.1} parent=43 // pred_check
          %p513 = pneg %p109
        $region46: #{tpu_custom_call.1} parent=43 // pred_check_branch
          %515 = sbr.rel (%p513) target = $region48
        $region47: #{tpu_custom_call.1} parent=43 // pred_region
          %p516 = scmp.lt.s32.totalorder %s18, 1
          %s517 = scalar_select %p516, %s18, 1
          %s518 = smul.addr %s517, 2
          %s519 = smul.addr %s518, 4
          %s520 = scalar_lea.vmem %s3, %s519
        $region48: #{tpu_custom_call.1} parent=43 // pred_fallthru
          _
      $region44: #{tpu_custom_call.1} parent=5 // pred_fallthru
        _
    $region6: #{tpu_custom_call.1} parent=1 // loop_footer
      %s16 = sadd.s32 1, %s12
    $region7: #{tpu_custom_call.1} parent=1 // loop_footer_branch
      %11 = sbr.rel target = $region3
    $region8: #{tpu_custom_call.1} parent=1 // loop_exit
      _
    %521 = vsyncpa [#allocation4], 1
    %s522 = scalar_lea.sflag [#allocation4], 1
    %523 = vsyncpa %s522, 1

</llo_original>
